<compile_context>
chip_gen: v7x
topology: tpu7x:2x2x1
jax: 0.10.0
libtpu: 0.0.40
codegen_flags: <defaults>
</compile_context>

<pallas_src>
import functools

import jax
import jax.numpy as jnp
from jax import lax
from jax.experimental import pallas as pl
from jax.experimental.pallas import tpu as pltpu

EPS = 1e-5

# Conservative across v5e/v6e (128 MiB VMEM) and v7x (64 MiB): leave headroom.
_VMEM_LIMIT = 48 * 1024 * 1024
# Streaming-path feature tile target (8 MiB: ~13% per-step overhead on v7x,
# ~6% on v6e, still >= roofline tile on v5e).
_STREAM_TILE_BYTES = 8 * 1024 * 1024
# Fast (VMEM-resident) path: resident output + 2 input tiles + accumulators
# must fit comfortably under _VMEM_LIMIT on every generation.
_FAST_FEAT_BYTES = 24 * 1024 * 1024
_FAST_TILE_BYTES = 2 * 1024 * 1024
_FAST_MAX_HW = 32768        # bounds the (1, hw) f32 accumulators
_FAST_MAX_ROWS = 4096       # bounds the lane-padded (rows, 1) gamma/beta columns
# Keep per-(b,c) scale/offset VMEM-resident in the normalize kernel only while
# their lane-padded footprint (512 B / row each) stays small.
_RESIDENT_COL_ROWS = 4096
# Bound the stats accumulators (32 * tc bytes each).
_ACC_MAX_TC = 65536


# -----------------------------------------------------------------------------
# Small helpers
# -----------------------------------------------------------------------------
def _mlp(x, w1, b1, w2, b2):
    h = jnp.maximum(x @ w1 + b1, 0.0)
    return h @ w2 + b2


def _fast_row_tile(rows, hw, esize, target_bytes):
    """Row tile for the fast path: multiple of 8 dividing rows (or rows itself)."""
    if rows < 8 or rows % 8 != 0:
        return rows
    max_tr = max(8, target_bytes // (hw * esize))
    tr = min(rows, max(8, (max_tr // 8) * 8))
    while rows % tr != 0:
        tr -= 8
    return tr


def _choose_tiles(rows, hw, esize, target_bytes, max_tc):
    """Pick (tr, tc): tc | hw with tc % 128 == 0 (or tc == hw), tr | rows with
    tr % 8 == 0 (or tr == rows), tr*tc*esize ~= target_bytes.  Exact division
    only: no partial edge blocks, so the stats never see padding."""
    rows_flexible = rows >= 8 and rows % 8 == 0
    tr_min = 8 if rows_flexible else rows
    # ---- lane (column) tile ----
    tc = hw
    if hw % 128 == 0:
        cap = min(max_tc, max(128, target_bytes // (max(tr_min, 1) * esize)))
        if hw > cap:
            d = (cap // 128) * 128
            while d >= 128:
                if hw % d == 0:
                    tc = d
                    break
                d -= 128
            # no suitable divisor: keep tc = hw (oversize block, still correct)
    # ---- sublane (row) tile ----
    if rows_flexible:
        max_tr = max(8, target_bytes // (tc * esize))
        tr = min(rows, max(8, (max_tr // 8) * 8))
        while rows % tr != 0:
            tr -= 8
    else:
        tr = rows
    return tr, tc


def _accumulate(xs, sum_acc, sumsq_acc):
    """Accumulate shifted per-lane partial sums / sums-of-squares.

    Per step this is vreg-wise VPU adds plus a single sublane fold; the
    expensive cross-lane reduction happens once, in the finalize.  Lane-parallel
    partials also make the f32 accumulation far more accurate than a scalar."""
    sum_acc[...] += jnp.sum(xs, axis=0, keepdims=True)
    sumsq_acc[...] += jnp.sum(xs * xs, axis=0, keepdims=True)


def _finalize_stats(sum_acc, sumsq_acc, shift_sc, n_total):
    """Combine accumulators into (mean, 1/sqrt(var + eps)); unbiased var (ddof=1)."""
    inv_n = 1.0 / n_total
    inv_nm1 = 1.0 / max(n_total - 1, 1)
    s = jnp.sum(sum_acc[...], keepdims=True)       # (1, 1)
    ss = jnp.sum(sumsq_acc[...], keepdims=True)    # (1, 1)
    mean = shift_sc[...] + s * inv_n
    var = (ss - s * s * inv_n) * inv_nm1           # shifted -> cancellation-safe
    return mean, lax.rsqrt(var + EPS)


# -----------------------------------------------------------------------------
# FAST path: single fused kernel, feature resident in VMEM (2x HBM traffic).
# -----------------------------------------------------------------------------
def _fused_kernel(feat_ref, gamma_ref, beta_ref, out_ref,
                  sum_acc, sumsq_acc, shift_sc, *, n_total, tr):
    i = pl.program_id(0)
    x = feat_ref[...].astype(jnp.float32)

    @pl.when(i == 0)
    def _prologue():
        sum_acc[...] = jnp.zeros_like(sum_acc)
        sumsq_acc[...] = jnp.zeros_like(sumsq_acc)
        # Shift by the first tile's mean: one extra VPU sub/element hardens the
        # one-pass variance against cancellation.
        shift_sc[...] = jnp.mean(x, keepdims=True)

    _accumulate(x - shift_sc[...], sum_acc, sumsq_acc)

    # Stage the raw tile into the resident output slab; the only HBM writeback
    # happens once, after the final grid step.
    r0 = i * tr
    if tr % 8 == 0:
        r0 = pl.multiple_of(r0, 8)
    out_ref[pl.ds(r0, tr), :] = feat_ref[...]

    @pl.when(i == pl.num_programs(0) - 1)
    def _finalize():
        mean, inv_std = _finalize_stats(sum_acc, sumsq_acc, shift_sc, n_total)
        scale = gamma_ref[...] * inv_std                  # (rows, 1)
        offset = beta_ref[...] - mean * scale             # (rows, 1)
        y = out_ref[...].astype(jnp.float32)
        out_ref[...] = (y * scale + offset).astype(out_ref.dtype)


def _fused_forward(feat2d, gamma_col, beta_col, n_total, tile_bytes):
    rows, hw = feat2d.shape
    esize = feat2d.dtype.itemsize
    target = _FAST_TILE_BYTES if tile_bytes is None else tile_bytes
    tr = _fast_row_tile(rows, hw, esize, target)
    grid_r = rows // tr

    kernel = functools.partial(_fused_kernel, n_total=n_total, tr=tr)
    ce = pl.CostEstimate(flops=6 * n_total, transcendentals=0,
                         bytes_accessed=2 * n_total * esize)
    return pl.pallas_call(
        kernel,
        grid=(grid_r,),
        in_specs=[pl.BlockSpec((tr, hw), lambda i: (i, 0)),
                  pl.BlockSpec((rows, 1), lambda i: (0, 0)),
                  pl.BlockSpec((rows, 1), lambda i: (0, 0))],
        out_specs=pl.BlockSpec((rows, hw), lambda i: (0, 0)),   # VMEM-resident
        out_shape=jax.ShapeDtypeStruct((rows, hw), feat2d.dtype),
        scratch_shapes=[pltpu.VMEM((1, hw), jnp.float32),   # shifted sum partials
                        pltpu.VMEM((1, hw), jnp.float32),   # shifted sumsq partials
                        pltpu.VMEM((1, 1), jnp.float32)],   # shift
        compiler_params=pltpu.CompilerParams(
            dimension_semantics=("arbitrary",),             # reduction + revisit
            vmem_limit_bytes=_VMEM_LIMIT),
        cost_estimate=ce,
    )(feat2d, gamma_col, beta_col)


# -----------------------------------------------------------------------------
# STREAMING path: kernel A (global stats) + tiny XLA glue + kernel B (normalize)
# -----------------------------------------------------------------------------
def _stats_kernel(feat_ref, mean_ref, inv_std_ref,
                  sum_acc, sumsq_acc, shift_sc, *, n_total):
    i, j = pl.program_id(0), pl.program_id(1)
    x = feat_ref[...].astype(jnp.float32)

    @pl.when(jnp.logical_and(i == 0, j == 0))
    def _prologue():
        sum_acc[...] = jnp.zeros_like(sum_acc)
        sumsq_acc[...] = jnp.zeros_like(sumsq_acc)
        shift_sc[...] = jnp.mean(x, keepdims=True)

    _accumulate(x - shift_sc[...], sum_acc, sumsq_acc)

    @pl.when(jnp.logical_and(i == pl.num_programs(0) - 1,
                             j == pl.num_programs(1) - 1))
    def _finalize():
        mean, inv_std = _finalize_stats(sum_acc, sumsq_acc, shift_sc, n_total)
        mean_ref[...] = mean
        inv_std_ref[...] = inv_std


def _normalize_kernel(feat_ref, scale_ref, offset_ref, out_ref):
    tr = feat_ref.shape[0]
    if scale_ref.shape[0] == tr:
        sc, of = scale_ref[...], offset_ref[...]
    else:
        # scale/offset are whole-array VMEM residents: slice this tile's rows
        # (one DMA for the whole grid instead of one tiny DMA per step).
        r0 = pl.multiple_of(pl.program_id(0) * tr, 8)
        sc = scale_ref[pl.ds(r0, tr), :]
        of = offset_ref[pl.ds(r0, tr), :]
    x = feat_ref[...].astype(jnp.float32)
    out_ref[...] = (x * sc + of).astype(out_ref.dtype)      # 2 VPU ops / element


def _streaming_forward(feat2d, gamma_col, beta_col, n_total, tile_bytes):
    rows, hw = feat2d.shape
    esize = feat2d.dtype.itemsize
    target = _STREAM_TILE_BYTES if tile_bytes is None else tile_bytes
    tr, tc = _choose_tiles(rows, hw, esize, target, _ACC_MAX_TC)
    grid = (rows // tr, hw // tc)

    # ---- pass 1: global mean / inv_std (feature read once) ----
    stats_kernel = functools.partial(_stats_kernel, n_total=n_total)
    ce_a = pl.CostEstimate(flops=4 * n_total, transcendentals=0,
                           bytes_accessed=n_total * esize)
    mean, inv_std = pl.pallas_call(
        stats_kernel,
        grid=grid,
        in_specs=[pl.BlockSpec((tr, tc), lambda i, j: (i, j))],
        out_specs=[pl.BlockSpec((1, 1), lambda i, j: (0, 0)),
                   pl.BlockSpec((1, 1), lambda i, j: (0, 0))],
        out_shape=[jax.ShapeDtypeStruct((1, 1), jnp.float32),
                   jax.ShapeDtypeStruct((1, 1), jnp.float32)],
        scratch_shapes=[pltpu.VMEM((1, tc), jnp.float32),
                        pltpu.VMEM((1, tc), jnp.float32),
                        pltpu.VMEM((1, 1), jnp.float32)],
        compiler_params=pltpu.CompilerParams(
            dimension_semantics=("arbitrary", "arbitrary"),
            vmem_limit_bytes=_VMEM_LIMIT),
        cost_estimate=ce_a,
    )(feat2d)
    # TODO(synk): on v7x split this grid with a leading 'parallel' axis of size 2
    # emitting per-core partial sums and combine them here (~2x stats bandwidth).

    # ---- fold gamma/beta/mean/inv_std into per-row scale & offset (tiny, XLA) --
    scale_col = gamma_col * inv_std
    offset_col = beta_col - mean * scale_col

    # ---- pass 2: normalize (read + write streams, megacore-parallel) ----
    if rows <= _RESIDENT_COL_ROWS:
        col_spec = pl.BlockSpec((rows, 1), lambda i, j: (0, 0))   # whole-array resident
    else:
        col_spec = pl.BlockSpec((tr, 1), lambda i, j: (i, 0))     # bound VMEM footprint
    ce_b = pl.CostEstimate(flops=2 * n_total, transcendentals=0,
                           bytes_accessed=2 * n_total * esize)
    return pl.pallas_call(
        _normalize_kernel,
        grid=grid,
        in_specs=[pl.BlockSpec((tr, tc), lambda i, j: (i, j)),
                  col_spec, col_spec],
        out_specs=pl.BlockSpec((tr, tc), lambda i, j: (i, j)),
        out_shape=jax.ShapeDtypeStruct((rows, hw), feat2d.dtype),
        compiler_params=pltpu.CompilerParams(
            dimension_semantics=("parallel", "parallel"),
            vmem_limit_bytes=_VMEM_LIMIT),
        cost_estimate=ce_b,
    )(feat2d, scale_col, offset_col)


# -----------------------------------------------------------------------------
# Public forward
# -----------------------------------------------------------------------------
@functools.partial(jax.jit, static_argnames=("force_streaming", "tile_bytes"))
def conditional_batch_norm(feature, lstm_emb, params, *,
                           force_streaming=False, tile_bytes=None):
    """feature: (B, C, H, W) NCHW; lstm_emb: (B, lstm_size); out_size == channels."""
    B, C, H, W = feature.shape
    rows, hw = B * C, H * W
    esize = feature.dtype.itemsize
    n_total = rows * hw

    # Tiny conditioning MLPs (left to XLA; see module comment).
    d_gamma = _mlp(lstm_emb, params["w1g"], params["b1g"], params["w2g"], params["b2g"])
    d_beta = _mlp(lstm_emb, params["w1b"], params["b1b"], params["w2b"], params["b2b"])
    gamma_col = (params["gammas"] + d_gamma).astype(jnp.float32).reshape(rows, 1)
    beta_col = (params["betas"] + d_beta).astype(jnp.float32).reshape(rows, 1)

    feat2d = feature.reshape(rows, hw)          # lane-dense 2-D slab

    feat_bytes = rows * hw * esize
    fast_ok = (not force_streaming
               and feat_bytes <= _FAST_FEAT_BYTES
               and hw <= _FAST_MAX_HW
               and rows <= _FAST_MAX_ROWS
               and (rows % 8 == 0 or feat_bytes <= 4 * 1024 * 1024))

    if fast_ok:
        out2d = _fused_forward(feat2d, gamma_col, beta_col, n_total, tile_bytes)
    else:
        out2d = _streaming_forward(feat2d, gamma_col, beta_col, n_total, tile_bytes)
    return out2d.reshape(B, C, H, W)


# -----------------------------------------------------------------------------
# Deterministic parameter init (mirrors the module's __init__):
#   Linear weights: xavier_uniform, biases: 0.1; betas = 0, gammas = 1.
# -----------------------------------------------------------------------------
def init_params(key, lstm_size, emb_size, out_size, batch_size, channels):
    def xavier(k, fan_in, fan_out):
        bound = (6.0 / (fan_in + fan_out)) ** 0.5
        return jax.random.uniform(k, (fan_in, fan_out), jnp.float32, -bound, bound)

    ks = jax.random.split(key, 4)
    return {
        "w1g": xavier(ks[0], lstm_size, emb_size),
        "b1g": jnp.full((1, emb_size), 0.1, jnp.float32),
        "w2g": xavier(ks[1], emb_size, out_size),
        "b2g": jnp.full((1, out_size), 0.1, jnp.float32),
        "w1b": xavier(ks[2], lstm_size, emb_size),
        "b1b": jnp.full((1, emb_size), 0.1, jnp.float32),
        "w2b": xavier(ks[3], emb_size, out_size),
        "b2b": jnp.full((1, out_size), 0.1, jnp.float32),
        "betas": jnp.zeros((batch_size, channels), jnp.float32),
        "gammas": jnp.ones((batch_size, channels), jnp.float32),
    }


def reference_forward(feature, lstm_emb, params):
    d_beta = _mlp(lstm_emb, params["w1b"], params["b1b"], params["w2b"], params["b2b"])
    d_gamma = _mlp(lstm_emb, params["w1g"], params["b1g"], params["w2g"], params["b2g"])
    beta = params["betas"] + d_beta
    gamma = params["gammas"] + d_gamma
    mean = jnp.mean(feature)
    var = jnp.var(feature, ddof=1)              # torch.var default: unbiased
    fn = (feature - mean) / jnp.sqrt(var + EPS)
    return fn * gamma[:, :, None, None] + beta[:, :, None, None]


if __name__ == "__main__":
    key = jax.random.PRNGKey(0)
    k1, k2, k3, k4, k5 = jax.random.split(key, 5)
    LSTM, EMB = 32, 32

    # -- case 1: primary small shape -> VMEM-resident fast path ----------------
    B, C, H, W = 2, 4, 16, 16
    feature = jax.random.normal(k1, (B, C, H, W), jnp.float32)
    lstm_emb = jax.random.normal(k2, (B, LSTM), jnp.float32)
    params = init_params(k3, LSTM, EMB, C, B, C)
    out = jax.block_until_ready(conditional_batch_norm(feature, lstm_emb, params))
    ref = reference_forward(feature, lstm_emb, params)
    assert out.shape == (B, C, H, W)
    assert jnp.allclose(out, ref, rtol=1e-4, atol=1e-4), "fast path mismatch"

    # -- case 2: multi-step fast path (small tiles force a pipelined grid) -----
    B2, C2, H2, W2 = 2, 8, 32, 32
    feature2 = jax.random.normal(k4, (B2, C2, H2, W2), jnp.float32)
    lstm_emb2 = jax.random.normal(k5, (B2, LSTM), jnp.float32)
    params2 = init_params(k3, LSTM, EMB, C2, B2, C2)
    ref2 = reference_forward(feature2, lstm_emb2, params2)
    out2 = jax.block_until_ready(
        conditional_batch_norm(feature2, lstm_emb2, params2, tile_bytes=32 * 1024))
    assert jnp.allclose(out2, ref2, rtol=1e-4, atol=1e-4), "tiled fast path mismatch"

    # -- case 3: streaming two-kernel path (stats pass + normalize pass) -------
    out3 = jax.block_until_ready(
        conditional_batch_norm(feature2, lstm_emb2, params2,
                               force_streaming=True, tile_bytes=32 * 1024))
    assert jnp.allclose(out3, ref2, rtol=1e-4, atol=1e-4), "streaming path mismatch"

    # -- case 4: rows not a multiple of 8 (full-rows block fallback) -----------
    B4, C4 = 1, 4
    feature4 = jax.random.normal(k4, (B4, C4, H, W), jnp.float32)
    lstm_emb4 = jax.random.normal(k5, (B4, LSTM), jnp.float32)
    params4 = init_params(k3, LSTM, EMB, C4, B4, C4)
    out4 = jax.block_until_ready(conditional_batch_norm(feature4, lstm_emb4, params4))
    assert jnp.allclose(out4, reference_forward(feature4, lstm_emb4, params4),
                        rtol=1e-4, atol=1e-4), "odd-rows fallback mismatch"

    print("KERNEL_OK")
</pallas_src>

<mosaic_0001>
module attributes {stable_mosaic.version = 11 : i64} {
  func.func @_fused_kernel(%arg0: i32, %arg1: memref<8x256xf32, #tpu.memory_space<vmem>>, %arg2: memref<8x1xf32, #tpu.memory_space<vmem>>, %arg3: memref<8x1xf32, #tpu.memory_space<vmem>>, %arg4: memref<8x256xf32, #tpu.memory_space<vmem>>, %arg5: memref<1x256xf32, #tpu.memory_space<vmem>>, %arg6: memref<1x256xf32, #tpu.memory_space<vmem>>, %arg7: memref<1x1xf32, #tpu.memory_space<vmem>>) attributes {dimension_semantics = [#tpu.dimension_semantics<arbitrary>], iteration_bounds = array<i64: 1>, scalar_prefetch = 0 : i64, scratch_operands = 3 : i64, tpu.core_type = #tpu.core_type<tc>, window_params = [{transform_indices = @transform_0, window_bounds = array<i64: 8, 256>}, {pipeline_mode = #tpu.pipeline_mode<synchronous>, transform_indices = @transform_1, window_bounds = array<i64: 8, 1>}, {pipeline_mode = #tpu.pipeline_mode<synchronous>, transform_indices = @transform_2, window_bounds = array<i64: 8, 1>}, {pipeline_mode = #tpu.pipeline_mode<synchronous>, transform_indices = @transform_3, window_bounds = array<i64: 8, 256>}]} {
    %c0 = arith.constant 0 : index
    %c0_0 = arith.constant 0 : index
    %0 = vector.load %arg1[%c0, %c0_0] : memref<8x256xf32, #tpu.memory_space<vmem>>, vector<8x256xf32>
    %c0_i32 = arith.constant 0 : i32
    %1 = arith.cmpi eq, %arg0, %c0_i32 : i32
    %2 = arith.extui %1 : i1 to i32
    %c0_i32_1 = arith.constant 0 : i32
    %3 = arith.cmpi ne, %2, %c0_i32_1 : i32
    scf.if %3 {
      %cst_18 = arith.constant 0.000000e+00 : f32
      %26 = vector.broadcast %cst_18 : f32 to vector<1x256xf32>
      %c0_19 = arith.constant 0 : index
      %c0_20 = arith.constant 0 : index
      %27 = vector.load %arg5[%c0_19, %c0_20] : memref<1x256xf32, #tpu.memory_space<vmem>>, vector<1x256xf32>
      tpu.vector_store %arg5[%c0_19, %c0_20], %26 {strides = array<i32>} : memref<1x256xf32, #tpu.memory_space<vmem>>, vector<1x256xf32>,
      %cst_21 = arith.constant 0.000000e+00 : f32
      %28 = vector.broadcast %cst_21 : f32 to vector<1x256xf32>
      %c0_22 = arith.constant 0 : index
      %c0_23 = arith.constant 0 : index
      %29 = vector.load %arg6[%c0_22, %c0_23] : memref<1x256xf32, #tpu.memory_space<vmem>>, vector<1x256xf32>
      tpu.vector_store %arg6[%c0_22, %c0_23], %28 {strides = array<i32>} : memref<1x256xf32, #tpu.memory_space<vmem>>, vector<1x256xf32>,
      %30 = vector.shape_cast %0 : vector<8x256xf32> to vector<1x8x256xf32>
      %cst_24 = arith.constant dense<0.000000e+00> : vector<1xf32>
      %31 = vector.multi_reduction <add>, %30, %cst_24 [1, 2] : vector<1x8x256xf32> to vector<1xf32>
      %32 = vector.shape_cast %31 : vector<1xf32> to vector<1x1x1xf32>
      %33 = vector.extract %32[0, 0, 0] : f32 from vector<1x1x1xf32>
      %34 = vector.broadcast %33 : f32 to vector<1x1xf32>
      %cst_25 = arith.constant 2.048000e+03 : f32
      %35 = vector.broadcast %cst_25 : f32 to vector<1x1xf32>
      %36 = arith.divf %34, %35 : vector<1x1xf32>
      %c0_26 = arith.constant 0 : index
      %c0_27 = arith.constant 0 : index
      %37 = vector.load %arg7[%c0_26, %c0_27] : memref<1x1xf32, #tpu.memory_space<vmem>>, vector<1x1xf32>
      tpu.vector_store %arg7[%c0_26, %c0_27], %36 {strides = array<i32>} : memref<1x1xf32, #tpu.memory_space<vmem>>, vector<1x1xf32>,
    } else {
    }
    %c0_2 = arith.constant 0 : index
    %c0_3 = arith.constant 0 : index
    %4 = vector.load %arg7[%c0_2, %c0_3] : memref<1x1xf32, #tpu.memory_space<vmem>>, vector<1x1xf32>
    %5 = vector.broadcast %4 : vector<1x1xf32> to vector<8x256xf32>
    %6 = arith.subf %0, %5 : vector<8x256xf32>
    %c0_4 = arith.constant 0 : index
    %c0_5 = arith.constant 0 : index
    %7 = vector.load %arg5[%c0_4, %c0_5] : memref<1x256xf32, #tpu.memory_space<vmem>>, vector<1x256xf32>
    %cst = arith.constant dense<0.000000e+00> : vector<256xf32>
    %8 = vector.multi_reduction <add>, %6, %cst [0] : vector<8x256xf32> to vector<256xf32>
    %9 = vector.shape_cast %8 : vector<256xf32> to vector<1x256xf32>
    %10 = arith.addf %7, %9 : vector<1x256xf32>
    %c0_6 = arith.constant 0 : index
    %c0_7 = arith.constant 0 : index
    %11 = vector.load %arg5[%c0_6, %c0_7] : memref<1x256xf32, #tpu.memory_space<vmem>>, vector<1x256xf32>
    tpu.vector_store %arg5[%c0_6, %c0_7], %10 {strides = array<i32>} : memref<1x256xf32, #tpu.memory_space<vmem>>, vector<1x256xf32>,
    %c0_8 = arith.constant 0 : index
    %c0_9 = arith.constant 0 : index
    %12 = vector.load %arg6[%c0_8, %c0_9] : memref<1x256xf32, #tpu.memory_space<vmem>>, vector<1x256xf32>
    %13 = arith.mulf %6, %6 : vector<8x256xf32>
    %cst_10 = arith.constant dense<0.000000e+00> : vector<256xf32>
    %14 = vector.multi_reduction <add>, %13, %cst_10 [0] : vector<8x256xf32> to vector<256xf32>
    %15 = vector.shape_cast %14 : vector<256xf32> to vector<1x256xf32>
    %16 = arith.addf %12, %15 : vector<1x256xf32>
    %c0_11 = arith.constant 0 : index
    %c0_12 = arith.constant 0 : index
    %17 = vector.load %arg6[%c0_11, %c0_12] : memref<1x256xf32, #tpu.memory_space<vmem>>, vector<1x256xf32>
    tpu.vector_store %arg6[%c0_11, %c0_12], %16 {strides = array<i32>} : memref<1x256xf32, #tpu.memory_space<vmem>>, vector<1x256xf32>,
    %c8_i32 = arith.constant 8 : i32
    %18 = arith.muli %arg0, %c8_i32 : i32
    %19 = tpu.assume_multiple %18, 8 : i32
    %c0_13 = arith.constant 0 : index
    %c0_14 = arith.constant 0 : index
    %20 = vector.load %arg1[%c0_13, %c0_14] : memref<8x256xf32, #tpu.memory_space<vmem>>, vector<8x256xf32>
    %21 = arith.index_cast %19 : i32 to index
    %c0_15 = arith.constant 0 : index
    %22 = vector.load %arg4[%21, %c0_15] : memref<8x256xf32, #tpu.memory_space<vmem>>, vector<8x256xf32>
    tpu.vector_store %arg4[%21, %c0_15], %20 {strides = array<i32>} : memref<8x256xf32, #tpu.memory_space<vmem>>, vector<8x256xf32>,
    %c0_i32_16 = arith.constant 0 : i32
    %23 = arith.cmpi eq, %arg0, %c0_i32_16 : i32
    %24 = arith.extui %23 : i1 to i32
    %c0_i32_17 = arith.constant 0 : i32
    %25 = arith.cmpi ne, %24, %c0_i32_17 : i32
    scf.if %25 {
      %c0_18 = arith.constant 0 : index
      %c0_19 = arith.constant 0 : index
      %26 = vector.load %arg5[%c0_18, %c0_19] : memref<1x256xf32, #tpu.memory_space<vmem>>, vector<1x256xf32>
      %27 = vector.shape_cast %26 : vector<1x256xf32> to vector<1x1x256xf32>
      %cst_20 = arith.constant dense<0.000000e+00> : vector<1xf32>
      %28 = vector.multi_reduction <add>, %27, %cst_20 [1, 2] : vector<1x1x256xf32> to vector<1xf32>
      %29 = vector.shape_cast %28 : vector<1xf32> to vector<1x1x1xf32>
      %30 = vector.extract %29[0, 0, 0] : f32 from vector<1x1x1xf32>
      %31 = vector.broadcast %30 : f32 to vector<1x1xf32>
      %c0_21 = arith.constant 0 : index
      %c0_22 = arith.constant 0 : index
      %32 = vector.load %arg6[%c0_21, %c0_22] : memref<1x256xf32, #tpu.memory_space<vmem>>, vector<1x256xf32>
      %33 = vector.shape_cast %32 : vector<1x256xf32> to vector<1x1x256xf32>
      %cst_23 = arith.constant dense<0.000000e+00> : vector<1xf32>
      %34 = vector.multi_reduction <add>, %33, %cst_23 [1, 2] : vector<1x1x256xf32> to vector<1xf32>
      %35 = vector.shape_cast %34 : vector<1xf32> to vector<1x1x1xf32>
      %36 = vector.extract %35[0, 0, 0] : f32 from vector<1x1x1xf32>
      %37 = vector.broadcast %36 : f32 to vector<1x1xf32>
      %c0_24 = arith.constant 0 : index
      %c0_25 = arith.constant 0 : index
      %38 = vector.load %arg7[%c0_24, %c0_25] : memref<1x1xf32, #tpu.memory_space<vmem>>, vector<1x1xf32>
      %cst_26 = arith.constant 4.8828125E-4 : f32
      %39 = vector.broadcast %cst_26 : f32 to vector<1x1xf32>
      %40 = arith.mulf %31, %39 : vector<1x1xf32>
      %41 = arith.addf %38, %40 : vector<1x1xf32>
      %42 = arith.mulf %31, %31 : vector<1x1xf32>
      %cst_27 = arith.constant 4.8828125E-4 : f32
      %43 = vector.broadcast %cst_27 : f32 to vector<1x1xf32>
      %44 = arith.mulf %42, %43 : vector<1x1xf32>
      %45 = arith.subf %37, %44 : vector<1x1xf32>
      %cst_28 = arith.constant 4.88519785E-4 : f32
      %46 = vector.broadcast %cst_28 : f32 to vector<1x1xf32>
      %47 = arith.mulf %45, %46 : vector<1x1xf32>
      %cst_29 = arith.constant 9.99999974E-6 : f32
      %48 = vector.broadcast %cst_29 : f32 to vector<1x1xf32>
      %49 = arith.addf %47, %48 : vector<1x1xf32>
      %50 = math.rsqrt %49 : vector<1x1xf32>
      %c0_30 = arith.constant 0 : index
      %c0_31 = arith.constant 0 : index
      %51 = vector.load %arg2[%c0_30, %c0_31] : memref<8x1xf32, #tpu.memory_space<vmem>>, vector<8x1xf32>
      %52 = vector.broadcast %50 : vector<1x1xf32> to vector<8x1xf32>
      %53 = arith.mulf %51, %52 : vector<8x1xf32>
      %c0_32 = arith.constant 0 : index
      %c0_33 = arith.constant 0 : index
      %54 = vector.load %arg3[%c0_32, %c0_33] : memref<8x1xf32, #tpu.memory_space<vmem>>, vector<8x1xf32>
      %55 = vector.broadcast %41 : vector<1x1xf32> to vector<8x1xf32>
      %56 = arith.mulf %55, %53 : vector<8x1xf32>
      %57 = arith.subf %54, %56 : vector<8x1xf32>
      %c0_34 = arith.constant 0 : index
      %c0_35 = arith.constant 0 : index
      %58 = vector.load %arg4[%c0_34, %c0_35] : memref<8x256xf32, #tpu.memory_space<vmem>>, vector<8x256xf32>
      %59 = vector.broadcast %53 : vector<8x1xf32> to vector<8x256xf32>
      %60 = arith.mulf %58, %59 : vector<8x256xf32>
      %61 = vector.broadcast %57 : vector<8x1xf32> to vector<8x256xf32>
      %62 = arith.addf %60, %61 : vector<8x256xf32>
      %c0_36 = arith.constant 0 : index
      %c0_37 = arith.constant 0 : index
      %63 = vector.load %arg4[%c0_36, %c0_37] : memref<8x256xf32, #tpu.memory_space<vmem>>, vector<8x256xf32>
      tpu.vector_store %arg4[%c0_36, %c0_37], %62 {strides = array<i32>} : memref<8x256xf32, #tpu.memory_space<vmem>>, vector<8x256xf32>,
    } else {
    }
    return
  }
  func.func @transform_0(%arg0: i32) -> (i32, i32) {
    %c0_i32 = arith.constant 0 : i32
    %c0_i32_0 = arith.constant 0 : i32
    return %arg0, %c0_i32 : i32, i32
  }
  func.func @transform_1(%arg0: i32) -> (i32, i32) {
    %c0_i32 = arith.constant 0 : i32
    %c0_i32_0 = arith.constant 0 : i32
    %c0_i32_1 = arith.constant 0 : i32
    return %c0_i32, %c0_i32_0 : i32, i32
  }
  func.func @transform_2(%arg0: i32) -> (i32, i32) {
    %c0_i32 = arith.constant 0 : i32
    %c0_i32_0 = arith.constant 0 : i32
    %c0_i32_1 = arith.constant 0 : i32
    return %c0_i32, %c0_i32_0 : i32, i32
  }
  func.func @transform_3(%arg0: i32) -> (i32, i32) {
    %c0_i32 = arith.constant 0 : i32
    %c0_i32_0 = arith.constant 0 : i32
    %c0_i32_1 = arith.constant 0 : i32
    return %c0_i32, %c0_i32_0 : i32, i32
  }
}

</mosaic_0001>

<llo_original>
// kernel: conditional_batch_norm.1
$region0: #{conditional_batch_norm.1}
  #allocation0 [shape = 'u32[]', space=smem, size = 0x4, offset = 0x4, fixed_abs, tag = 'smem constant byte address 0x4 - core index']
  #allocation1 [shape = 'u32[144,128]{1,0:T(1,128)}', space=vmem, size = 0x12000, scoped, tag = 'internal scratch']
  #allocation2 [shape = 'f32[1,256]{1,0:T(1,128)}', space=vmem, size = 0x400, scoped, tag = 'scratch operand']
  #allocation3 [shape = 'f32[1,256]{1,0:T(1,128)}', space=vmem, size = 0x400, scoped, tag = 'scratch operand']
  #allocation4 [shape = 'f32[1,1]{1,0:T(1,128)}', space=vmem, size = 0x200, scoped, tag = 'scratch operand']
  %s0 = inlined_call_operand.vmem [shape: f32[8,256], index: 0, kind: input, shape index: {}]
  %s1 = inlined_call_operand.vmem [shape: f32[8,1], index: 1, kind: input, shape index: {}]
  %s2 = inlined_call_operand.vmem [shape: f32[8,1], index: 2, kind: input, shape index: {}]
  %s3 = inlined_call_operand.vmem [shape: f32[8,256], index: 3, kind: output, shape index: {}]
  %s4 = sld [smem:[#allocation0]]
  $region30: #{conditional_batch_norm.1} parent=0
    _
  %s6 = ssub.s32 1, %s4
  %s7 = scalar_select 0, %s6, %s4
  // Predicated region
  $region2: #{conditional_batch_norm.1} parent=0 // pred_check
    _
  $region3: #{conditional_batch_norm.1} parent=0 // pred_check_branch
    %9 = sbr.rel (0) target = $region5
  $region4: #{conditional_batch_norm.1} parent=0 // pred_region
    _
  $region5: #{conditional_batch_norm.1} parent=0 // pred_fallthru
    _
  // Predicated region
  $region6: #{conditional_batch_norm.1} parent=0 // pred_check
    _
  $region7: #{conditional_batch_norm.1} parent=0 // pred_check_branch
    %11 = sbr.rel (0) target = $region9
  $region8: #{conditional_batch_norm.1} parent=0 // pred_region
    _
  $region9: #{conditional_batch_norm.1} parent=0 // pred_fallthru
    _
  // Predicated region
  $region10: #{conditional_batch_norm.1} parent=0 // pred_check
    _
  $region11: #{conditional_batch_norm.1} parent=0 // pred_check_branch
    %13 = sbr.rel (0) target = $region13
  $region12: #{conditional_batch_norm.1} parent=0 // pred_region
    _
  $region13: #{conditional_batch_norm.1} parent=0 // pred_fallthru
    _
  %v14 = vld [vmem:[%s0] sm:$0xff]
  %v15 = vld [vmem:[%s0 + $0x8] sm:$0xff]
  %p16 = scmp.eq.s32.totalorder 0, 0
  // Predicated region
  $region14: #{conditional_batch_norm.1} parent=0 // pred_check
    %p17 = pneg %p16
  $region15: #{conditional_batch_norm.1} parent=0 // pred_check_branch
    %19 = sbr.rel (%p17) target = $region17
  $region16: #{conditional_batch_norm.1} parent=0 // pred_region
    %v20 = vlaneseq
    %vm21 = vcmp.ge.s32.totalorder %v20, 0
    %vm22 = vcmp.lt.s32.totalorder %v20, 256
    %vm23 = vmand %vm21, %vm22
    %24 = vst.msk [vmem:[#allocation2] sm:$0x3] %vm23, 0.0
    %25 = vst.msk [vmem:[#allocation3] sm:$0x3] %vm23, 0.0
    %v26 = vadd.f32 %v14, %v15
    %27 = vadd.xlane.f32.xlu0 %v26
    %v28 = vpop.xlane.xlu0 %27
    %v29 = vrot.slane %v28, 4
    %v30 = vadd.f32 %v28, %v29
    %v31 = vrot.slane %v30, 2
    %v32 = vadd.f32 %v30, %v31
    %v33 = vrot.slane %v32, 1
    %v34 = vadd.f32 %v32, %v33
    %s35 = vtos %v34
    %v36 = vstv %s35
    %v37 = vrcp.pop 2048.0
    %v38 = vmul.f32 %v36, %v37
    %vm39 = vcmask 0
    %40 = vst.msk [vmem:[#allocation4] sm:$0x1] %vm39, %v38
  $region17: #{conditional_batch_norm.1} parent=0 // pred_fallthru
    _
  %v41 = vld [vmem:[#allocation4] sm:$0x1]
  %v43 = vlaneseq
  %v44 = vshrl.u32 %v43, 7
  %v45 = vsub.s32 0, %v44
  %v46 = vrot.slane %v41, %v45
  %47 = vset.pattern.permute.xlu0 0
  %48 = vperm.xlu0 %47, %v46
  %v49 = vpop.permute.xlu0 %48
  %v51 = vsub.f32 %v14, %v49
  %v52 = vsub.f32 %v15, %v49
  %v53 = vld [vmem:[#allocation2] sm:$0x3]
  %v54 = vrot.slane %v51, 4
  %v55 = vadd.f32 %v51, %v54
  %v56 = vrot.slane %v55, 2
  %v57 = vadd.f32 %v55, %v56
  %v58 = vrot.slane %v57, 1
  %v59 = vadd.f32 %v57, %v58
  %v60 = vrot.slane %v52, 4
  %v61 = vadd.f32 %v52, %v60
  %v62 = vrot.slane %v61, 2
  %v63 = vadd.f32 %v61, %v62
  %v64 = vrot.slane %v63, 1
  %v65 = vadd.f32 %v63, %v64
  %v68 = vcombine.low %v59, %v65
  %v70 = vunpack.c.l.s4 1966171168
  %v71 = vunpack.c.0.s8 %v70
  %v72 = vlaneseq
  %v73 = vshrl.u32 %v72, 7
  %v74 = vsub.s32 %v71, %v73
  %v75 = vrot.slane %v68, %v74
  %v77 = vunpack.c.l.s4 1966171168
  %v78 = vunpack.c.0.s8 %v77
  %v79 = vlaneseq
  %v80 = vshrl.u32 %v79, 7
  %v81 = vsub.s32 %v78, %v80
  %v82 = vrot.slane %v75, %v81
  %v84 = vadd.f32 %v53, %v82
  %v85 = vlaneseq
  %vm86 = vcmp.ge.s32.totalorder %v85, 0
  %vm87 = vcmp.lt.s32.totalorder %v85, 256
  %vm88 = vmand %vm86, %vm87
  %89 = vst.msk [vmem:[#allocation2] sm:$0x3] %vm88, %v84
  %v90 = vld [vmem:[#allocation3] sm:$0x3]
  %v91 = vmul.f32 %v51, %v51
  %v92 = vmul.f32 %v52, %v52
  %v93 = vrot.slane %v91, 4
  %v94 = vadd.f32 %v91, %v93
  %v95 = vrot.slane %v94, 2
  %v96 = vadd.f32 %v94, %v95
  %v97 = vrot.slane %v96, 1
  %v98 = vadd.f32 %v96, %v97
  %v99 = vrot.slane %v92, 4
  %v100 = vadd.f32 %v92, %v99
  %v101 = vrot.slane %v100, 2
  %v102 = vadd.f32 %v100, %v101
  %v103 = vrot.slane %v102, 1
  %v104 = vadd.f32 %v102, %v103
  %v107 = vcombine.low %v98, %v104
  %v109 = vunpack.c.l.s4 1966171168
  %v110 = vunpack.c.0.s8 %v109
  %v111 = vlaneseq
  %v112 = vshrl.u32 %v111, 7
  %v113 = vsub.s32 %v110, %v112
  %v114 = vrot.slane %v107, %v113
  %v116 = vunpack.c.l.s4 1966171168
  %v117 = vunpack.c.0.s8 %v116
  %v118 = vlaneseq
  %v119 = vshrl.u32 %v118, 7
  %v120 = vsub.s32 %v117, %v119
  %v121 = vrot.slane %v114, %v120
  %v123 = vadd.f32 %v90, %v121
  %124 = vst.msk [vmem:[#allocation3] sm:$0x3] %vm88, %v123
  %s125 = smul.u32 0, 8
  %v126 = vld [vmem:[%s0] sm:$0xff]
  %v127 = vld [vmem:[%s0 + $0x8] sm:$0xff]
  %s128 = sshra.s32 %s125, 3
  %s129 = sand.u32 %s125, 7
  %s130 = smul.u32 %s128, 2
  %s131 = smul.addr %s130, 8
  %s132 = scalar_lea.vmem %s3, %s131
  %133 = vst [vmem:[%s132] sm:$0xff] %v126
  %134 = vst [vmem:[%s132 + $0x8] sm:$0xff] %v127
  // Predicated region
  $region18: #{conditional_batch_norm.1} parent=0 // pred_check
    %p135 = pneg %p16
  $region19: #{conditional_batch_norm.1} parent=0 // pred_check_branch
    %137 = sbr.rel (%p135) target = $region21
  $region20: #{conditional_batch_norm.1} parent=0 // pred_region
    %v138 = vld [vmem:[#allocation2] sm:$0x3]
    %v140 = vlaneseq
    %v141 = vshrl.u32 %v140, 7
    %v142 = vsub.s32 0, %v141
    %v143 = vrot.slane %v138, %v142
    %v144 = vlaneseq
    %v145 = vshrl.u32 %v144, 7
    %v146 = vsub.s32 1, %v145
    %v147 = vrot.slane %v138, %v146
    %vm150 = vcmask 1040384
    %v151 = vsel %vm150, %v143, 0.0
    %v152 = vsel %vm150, %v147, 0.0
    %v153 = vadd.f32 %v151, %v152
    %154 = vadd.xlane.f32.xlu0 %v153
    %v155 = vpop.xlane.xlu0 %154
    %v156 = vrot.slane %v155, 4
    %v157 = vadd.f32 %v155, %v156
    %v158 = vrot.slane %v157, 2
    %v159 = vadd.f32 %v157, %v158
    %v160 = vrot.slane %v159, 1
    %v161 = vadd.f32 %v159, %v160
    %s162 = vtos %v161
    %v163 = vstv %s162
    %v164 = vld [vmem:[#allocation3] sm:$0x3]
    %v166 = vlaneseq
    %v167 = vshrl.u32 %v166, 7
    %v168 = vsub.s32 0, %v167
    %v169 = vrot.slane %v164, %v168
    %v170 = vlaneseq
    %v171 = vshrl.u32 %v170, 7
    %v172 = vsub.s32 1, %v171
    %v173 = vrot.slane %v164, %v172
    %v176 = vsel %vm150, %v169, 0.0
    %v177 = vsel %vm150, %v173, 0.0
    %v178 = vadd.f32 %v176, %v177
    %179 = vadd.xlane.f32.xlu0 %v178
    %v180 = vpop.xlane.xlu0 %179
    %v181 = vrot.slane %v180, 4
    %v182 = vadd.f32 %v180, %v181
    %v183 = vrot.slane %v182, 2
    %v184 = vadd.f32 %v182, %v183
    %v185 = vrot.slane %v184, 1
    %v186 = vadd.f32 %v184, %v185
    %s187 = vtos %v186
    %v188 = vstv %s187
    %v189 = vld [vmem:[#allocation4] sm:$0x1]
    %v190 = vmul.f32 %v163, 0.00048828125
    %v191 = vadd.f32 %v189, %v190
    %v192 = vmul.f32 %v163, %v163
    %v193 = vmul.f32 %v192, 0.00048828125
    %v194 = vsub.f32 %v188, %v193
    %v195 = vmul.f32 %v194, 0.0004885198
    %v196 = vadd.f32 %v195, 1e-05
    %v197 = vrsqrt.pop %v196
    %v198 = vld [vmem:[%s1] sm:$0xff]
    %v199 = vmul.f32 %v198, %v197
    %v200 = vld [vmem:[%s2] sm:$0xff]
    %v202 = vlaneseq
    %v203 = vshrl.u32 %v202, 7
    %v204 = vsub.s32 0, %v203
    %v205 = vrot.slane %v191, %v204
    %v207 = vmul.f32 %v205, %v199
    %v208 = vsub.f32 %v200, %v207
    %v209 = vld [vmem:[%s3] sm:$0xff]
    %v210 = vld [vmem:[%s3 + $0x8] sm:$0xff]
    %212 = vset.pattern.permute.xlu0 0
    %213 = vperm.xlu0 %212, %v199
    %v214 = vpop.permute.xlu0 %213
    %v216 = vmul.f32 %v209, %v214
    %v217 = vmul.f32 %v210, %v214
    %219 = vset.pattern.permute.xlu0 0
    %220 = vperm.xlu0 %219, %v208
    %v221 = vpop.permute.xlu0 %220
    %v223 = vadd.f32 %v216, %v221
    %v224 = vadd.f32 %v217, %v221
    %225 = vst [vmem:[%s3] sm:$0xff] %v223
    %226 = vst [vmem:[%s3 + $0x8] sm:$0xff] %v224
  $region21: #{conditional_batch_norm.1} parent=0 // pred_fallthru
    _
  // Predicated region
  $region22: #{conditional_batch_norm.1} parent=0 // pred_check
    _
  $region23: #{conditional_batch_norm.1} parent=0 // pred_check_branch
    %228 = sbr.rel (0) target = $region25
  $region24: #{conditional_batch_norm.1} parent=0 // pred_region
    _
  $region25: #{conditional_batch_norm.1} parent=0 // pred_fallthru
    _
  // Predicated region
  $region26: #{conditional_batch_norm.1} parent=0 // pred_check
    _
  $region27: #{conditional_batch_norm.1} parent=0 // pred_check_branch
    %230 = sbr.rel (0) target = $region29
  $region28: #{conditional_batch_norm.1} parent=0 // pred_region
    _
  $region29: #{conditional_batch_norm.1} parent=0 // pred_fallthru
    _

</llo_original>
